<compile_context>
chip_gen: v7x
topology: tpu7x:2x2x1
jax: 0.10.0
libtpu: 0.0.40
codegen_flags: <defaults>
</compile_context>

<pallas_src>
from abc import abstractmethod
from typing import Any, List

import numpy as np

import jax
import jax.numpy as jnp
from jax.experimental import pallas as pl
from jax.experimental.pallas import tpu as pltpu


# ----------------------------------------------------------------------------
# Pallas kernel: degenerate (identity) forward of the abstract base class.
# ----------------------------------------------------------------------------
def _copy_kernel(x_ref, o_ref):
    # Pure vld -> vst stream; no VPU/EUP/XLU work added.
    o_ref[...] = x_ref[...]


def _pick_tile_rows(rows: int, cols: int, itemsize: int) -> int:
    """Largest row tile (multiple of 8) keeping one block around ~2 MiB."""
    target_block_bytes = 2 * 1024 * 1024
    t = max(8, target_block_bytes // max(1, cols * itemsize))
    t = (t // 8) * 8          # sublane rule: multiple of 8 when splitting
    t = max(8, min(t, 4096))
    if rows <= t:
        return rows            # full extent is always legal
    return t


def _pallas_passthrough(x2d: jnp.ndarray) -> jnp.ndarray:
    """Tiled, lane-dense, aliased pass-through copy on TPU."""
    rows, cols = x2d.shape
    tile_r = _pick_tile_rows(rows, cols, x2d.dtype.itemsize)
    grid = (pl.cdiv(rows, tile_r),)
    return pl.pallas_call(
        _copy_kernel,
        out_shape=jax.ShapeDtypeStruct((rows, cols), x2d.dtype),
        grid=grid,
        in_specs=[pl.BlockSpec((tile_r, cols), lambda i: (i, 0))],
        out_specs=pl.BlockSpec((tile_r, cols), lambda i: (i, 0)),
        # Output aliases the input buffer: a donating caller gets a true
        # in-place no-op instead of an HBM read+write round trip.
        input_output_aliases={0: 0},
        compiler_params=pltpu.CompilerParams(
            dimension_semantics=("parallel",),   # shard grid across TCs (v7x)
            vmem_limit_bytes=32 * 1024 * 1024,   # explicit, safe on v5e-v7x
        ),
    )(x2d)


# ----------------------------------------------------------------------------
# JAX mirror of the PyTorch BaseVAE skeleton.
# ----------------------------------------------------------------------------
class BaseVAE:
    """JAX/Pallas mirror of the abstract PyTorch BaseVAE.

    The PyTorch __init__ defines no parameters or buffers, so nothing is
    initialized here.  Subclasses provide the real encode/decode/forward;
    this base class only mirrors the structural contract.
    """

    def __init__(self) -> None:
        # PyTorch __init__ only calls super().__init__(); no params/buffers.
        pass

    def encode(self, input: jnp.ndarray) -> List[jnp.ndarray]:
        raise NotImplementedError

    def decode(self, input: jnp.ndarray) -> Any:
        raise NotImplementedError

    def sample(self, batch_size: int, current_device: int, **kwargs) -> jnp.ndarray:
        raise NotImplementedError

    def generate(self, x: jnp.ndarray, **kwargs) -> jnp.ndarray:
        raise NotImplementedError

    @abstractmethod  # mirrors the reference; class is not an ABC, so inert.
    def forward(self, *inputs: jnp.ndarray) -> jnp.ndarray:
        # TODO(synk): forward() is @abstractmethod in the reference module —
        # there is no concrete computation to translate.  The default here is
        # a Pallas aliased pass-through so the TPU data path is exercised.
        x = inputs[0]
        n, c, h, w = x.shape  # NCHW, matching the PyTorch convention.
        hw = h * w
        total = n * c * hw
        if hw % 128 == 0:
            x2d = x.reshape(n * c, hw)          # lane-dense: last dim % 128 == 0
        elif total % 128 == 0:
            x2d = x.reshape(total // 128, 128)  # fallback lane-dense slab
        else:
            # TODO(synk): non-lane-aligned shapes: identity needs no compute,
            # so return the input directly rather than emit masked stores.
            return x
        y2d = _pallas_passthrough(x2d)
        return y2d.reshape(n, c, h, w)

    @abstractmethod
    def loss_function(self, *inputs: Any, **kwargs) -> jnp.ndarray:
        raise NotImplementedError

    def __call__(self, *inputs: jnp.ndarray) -> jnp.ndarray:
        return self.forward(*inputs)


if __name__ == "__main__":
    key = jax.random.PRNGKey(0)
    # Small NCHW input consistent with an image-VAE style module.
    x = jax.random.normal(key, (2, 4, 16, 16), dtype=jnp.float32)
    x_host = np.asarray(x)  # host snapshot (robust even under donation)

    model = BaseVAE()
    y = model(x)
    y = jax.block_until_ready(y)

    assert y.shape == x_host.shape and y.dtype == x_host.dtype
    assert np.allclose(np.asarray(y), x_host)
    print("KERNEL_OK")
</pallas_src>

<mosaic_0001>
module attributes {stable_mosaic.version = 11 : i64} {
  func.func @_copy_kernel(%arg0: i32, %arg1: memref<8x256xf32, #tpu.memory_space<vmem>>, %arg2: memref<8x256xf32, #tpu.memory_space<vmem>>) attributes {dimension_semantics = [#tpu.dimension_semantics<parallel>], iteration_bounds = array<i64: 1>, scalar_prefetch = 0 : i64, scratch_operands = 0 : i64, tpu.core_type = #tpu.core_type<tc>, window_params = [{transform_indices = @transform_0, window_bounds = array<i64: 8, 256>}, {transform_indices = @transform_1, window_bounds = array<i64: 8, 256>}]} {
    %c0 = arith.constant 0 : index
    %c0_0 = arith.constant 0 : index
    %0 = vector.load %arg1[%c0, %c0_0] : memref<8x256xf32, #tpu.memory_space<vmem>>, vector<8x256xf32>
    %c0_1 = arith.constant 0 : index
    %c0_2 = arith.constant 0 : index
    %1 = vector.load %arg2[%c0_1, %c0_2] : memref<8x256xf32, #tpu.memory_space<vmem>>, vector<8x256xf32>
    tpu.vector_store %arg2[%c0_1, %c0_2], %0 {strides = array<i32>} : memref<8x256xf32, #tpu.memory_space<vmem>>, vector<8x256xf32>,
    return
  }
  func.func @transform_0(%arg0: i32) -> (i32, i32) {
    %c0_i32 = arith.constant 0 : i32
    %c0_i32_0 = arith.constant 0 : i32
    return %arg0, %c0_i32 : i32, i32
  }
  func.func @transform_1(%arg0: i32) -> (i32, i32) {
    %c0_i32 = arith.constant 0 : i32
    %c0_i32_0 = arith.constant 0 : i32
    return %arg0, %c0_i32 : i32, i32
  }
}

</mosaic_0001>

<llo_original>
// kernel: tpu_custom_call.1
$region0: #{tpu_custom_call.1}
  #allocation0 [shape = 'u32[]', space=smem, size = 0x4, offset = 0x4, fixed_abs, tag = 'smem constant byte address 0x4 - core index']
  #allocation1 [shape = 'u32[144,128]{1,0:T(1,128)}', space=vmem, size = 0x12000, scoped, tag = 'internal scratch']
  %s0 = inlined_call_operand.hbm [shape: f32[8,256], index: 0, kind: input, shape index: {}, may-alias: {0,1}]
  %s1 = inlined_call_operand.hbm [shape: f32[8,256], index: 1, kind: output, shape index: {}, may-alias: {0,1}]
  %s2 = sld [smem:[#allocation0]]
  $region18: #{tpu_custom_call.1} parent=0
    _
  %s4 = ssub.s32 1, %s2
  %s5 = scalar_select 0, %s4, %s2
  $region1: #{tpu_custom_call.1} parent=0
    #allocation2 [shape = 'u8[8192]{0}', space=vmem, size = 0x2000, scoped, tag = 'input window, operand 0, single buffered']
    #allocation3 [shape = 's32[1]{0}', space=sflag, size = 0x4, scoped, tag = 'scoped memory for tpu_custom_call.1']
    #allocation4 [shape = 's32[1]{0}', space=sflag, size = 0x4, scoped, tag = 'scoped memory for tpu_custom_call.1']
    #allocation5 [shape = 'u8[8192]{0}', space=vmem, size = 0x2000, scoped, tag = 'output window, operand 0, single buffered']
    %6 = vsyncpa [#allocation3], 0
    %7 = vsyncpa [#allocation4], 0
    // Predicated region
    $region2: #{tpu_custom_call.1} parent=1 // pred_check
      _
    $region3: #{tpu_custom_call.1} parent=1 // pred_check_branch
      %9 = sbr.rel (0) target = $region5
    $region4: #{tpu_custom_call.1} parent=1 // pred_region
      %s11 = ssub.s32 256, 256
      %12 = vsyncadd [#allocation3], %s11
      %s14 = sshll.u32 [#allocation2], 4
      %s15 = int_to_ptr.vmem [resolvable:$true] %s14
      %17 = dma.hbm_to_vmem [thread:$0]  %s0, 256, %s15, [#allocation3]
    $region5: #{tpu_custom_call.1} parent=1 // pred_fallthru
      _
    // Predicated region
    $region6: #{tpu_custom_call.1} parent=1 // pred_check
      _
    $region7: #{tpu_custom_call.1} parent=1 // pred_check_branch
      %19 = sbr.rel (0) target = $region9
    $region8: #{tpu_custom_call.1} parent=1 // pred_region
      %20 = dma.done [#allocation3], 256
    $region9: #{tpu_custom_call.1} parent=1 // pred_fallthru
      _
    %v21 = vld [vmem:[#allocation2] sm:$0xff]
    %v22 = vld [vmem:[#allocation2 + $0x8] sm:$0xff]
    %23 = vst [vmem:[#allocation5] sm:$0xff] %v21
    %24 = vst [vmem:[#allocation5 + $0x8] sm:$0xff] %v22
    // Predicated region
    $region10: #{tpu_custom_call.1} parent=1 // pred_check
      _
    $region11: #{tpu_custom_call.1} parent=1 // pred_check_branch
      %26 = sbr.rel (0) target = $region13
    $region12: #{tpu_custom_call.1} parent=1 // pred_region
      %s28 = ssub.s32 256, 256
      %29 = vsyncadd [#allocation4], %s28
      %s31 = sshll.u32 [#allocation5], 4
      %s32 = int_to_ptr.vmem [resolvable:$true] %s31
      %34 = dma.vmem_to_hbm [thread:$0]  %s32, 256, %s1, [#allocation4]
    $region13: #{tpu_custom_call.1} parent=1 // pred_fallthru
      _
    // Predicated region
    $region14: #{tpu_custom_call.1} parent=1 // pred_check
      _
    $region15: #{tpu_custom_call.1} parent=1 // pred_check_branch
      %36 = sbr.rel (0) target = $region17
    $region16: #{tpu_custom_call.1} parent=1 // pred_region
      %37 = dma.done [#allocation4], 256
    $region17: #{tpu_custom_call.1} parent=1 // pred_fallthru
      _
    %38 = vsyncpa [#allocation3], 1
    %39 = vsyncpa [#allocation4], 1

</llo_original>
